<compile_context>
chip_gen: v7x
topology: tpu7x:2x2x1
jax: 0.10.0
libtpu: 0.0.40
codegen_flags: <defaults>
</compile_context>

<pallas_src>
import functools

import jax
import jax.numpy as jnp
from jax.experimental import pallas as pl
from jax.experimental.pallas import tpu as pltpu


# ----------------------------- kernel helpers -------------------------------

def _gelu(x):
    return jax.nn.gelu(x, approximate=True)


def _layernorm(x, gamma, beta, eps=1e-5):
    mu = jnp.mean(x, axis=-1, keepdims=True)
    var = jnp.mean(jnp.square(x - mu), axis=-1, keepdims=True)
    return (x - mu) * jax.lax.rsqrt(var + eps) * gamma[None, :] + beta[None, :]


def _round_up(a, m):
    return (a + m - 1) // m * m


# Prepared-parameter layout (built once in prepare_apg_params):
#   W5   (5, D, D) bf16 : 0 mlp_in.fc1 | 1 mlp_in.fc2 | 2 attn.proj | 3 mlp_out.fc1 | 4 mlp_out.fc2
#   Wqkv (D, 3D)   bf16 : [Wq*scale | Wk | Wv*scale]
#   Kbd  (D, H*slot) bf16 : block-diagonal prompt-token keys  (head h -> lanes [h*slot, ...))
#   Vbd  (H*slot, D) bf16 : block-diagonal prompt-token values (post-softmax scale folded in)
#   B7   (7, D)    f32  : 0 mlp_in.fc1.b | 1 mlp_in.fc2.b | 2 norm3.g | 3 norm3.b
#                         4 attn.proj.b | 5 mlp_out.fc1.b | 6 mlp_out.fc2.b
#   Bqkv (1, 3D)   f32  : [bq*scale | bk | bv*scale]

def apg_kernel(x_ref, w5_ref, wqkv_ref, kbd_ref, vbd_ref, b_ref, bqkv_ref,
               out_ref, attn_ref, *, num_heads, n_tok, slot):
    f32, bf16 = jnp.float32, jnp.bfloat16
    x = x_ref[...]                       # (TB, D) img_feat rows (batch padded to tile)
    TB, D = x.shape
    hd = D // num_heads

    def lin(h, wi, bi):
        # bf16 MXU operands, f32 accumulate, f32 bias add.
        return (jnp.dot(h.astype(bf16), w5_ref[wi], preferred_element_type=f32)
                + b_ref[bi][None, :])

    # ---- MLPs_in (the spec'd Mlp): fc1 -> GELU -> (drop) -> fc2 -> (drop) ----
    q = lin(_gelu(lin(x, 0, 0)), 1, 1)

    # ---- norm3 (LayerNorm over embedding dim, f32) ----
    q_new = _layernorm(q, b_ref[2], b_ref[3])

    # ---- fused QKV projection (scales already folded into weights/biases) ----
    qkv = (jnp.dot(q_new.astype(bf16), wqkv_ref[...], preferred_element_type=f32)
           + bqkv_ref[...])                                  # (TB, 3D)
    q_lin = qkv[:, :D]                                       # already * scale
    k_x = qkv[:, D:2 * D]
    v_x = qkv[:, 2 * D:]                                     # already * scale

    # all-head prompt-token logits in ONE matmul against the precomputed
    # block-diagonal key slab; result is already head-packed along lanes.
    logits_tok = jnp.dot(q_lin.astype(bf16), kbd_ref[...],
                         preferred_element_type=f32)         # (TB, H*slot)
    prod = q_lin * k_x                                       # per-head x-logit source

    zpad = jnp.zeros((TB, slot - n_tok), f32)                # hoisted, reused per head
    at_pieces, cx_pieces, attn_pieces = [], [], []
    for h in range(num_heads):                               # VPU/XLU-only loop
        lo, co = h * hd, h * slot
        lx = jnp.sum(prod[:, lo:lo + hd], axis=-1, keepdims=True)     # (TB, 1)
        lt = logits_tok[:, co:co + n_tok]                              # (TB, P)
        # two-term online softmax: x-logit kept as its own column, no (P+1) concat.
        m = jnp.maximum(jnp.max(lt, axis=-1, keepdims=True), lx)
        e_x = jnp.exp(lx - m)
        e_t = jnp.exp(lt - m)
        inv = pl.reciprocal(e_x + jnp.sum(e_t, axis=-1, keepdims=True), approx=True)
        # NOTE: the PyTorch source's post-softmax `* self.scale` is folded into V.
        cx_pieces.append((e_x * inv) * v_x[:, lo:lo + hd])             # (TB, hd)
        at_pieces.append(e_t * inv)
        at_pieces.append(zpad)
        # raw (pre-softmax) logits, head-block lane layout: [x, tok_0..tok_{P-1}, 0..]
        attn_pieces.append(lx)
        attn_pieces.append(logits_tok[:, co:co + slot - 1])

    # token part of the context: one matmul against the block-diagonal value slab;
    # output lanes are already the head-concatenated embedding.
    a_t_all = jnp.concatenate(at_pieces, axis=-1)            # (TB, H*slot)
    ctx = (jnp.concatenate(cx_pieces, axis=-1)
           + jnp.dot(a_t_all.astype(bf16), vbd_ref[...],
                     preferred_element_type=f32))            # (TB, D)

    # ---- output projection (single full-K matmul) + residual ----
    x_cls = q_new + lin(ctx, 2, 4)

    # ---- MLPs_out (the spec'd Mlp again): fc1 -> GELU -> fc2 ----
    # (e-prompt last dim D < 128 lanes -> masked stores; small stream, acceptable.)
    out_ref[...] = lin(_gelu(lin(x_cls, 3, 5)), 4, 6)

    # single lane-dense (TB, H*slot) store of the raw attention logits.
    attn_ref[...] = jnp.concatenate(attn_pieces, axis=-1)


# ----------------------- one-time parameter preparation ----------------------

def prepare_apg_params(params, text_tokens, *, task_id=0, num_heads=4):
    """Cold-path restack: bf16 weight stacks, fused QKV with attention scales folded
    in, and the (batch-constant) prompt-token K/V projected once into block-diagonal
    bf16 slabs. Call once; pass the result to apg_forward."""
    W = params["W"].astype(jnp.float32)
    V = params["V"].astype(jnp.float32)
    D = W.shape[-1]
    assert D % num_heads == 0, "embedding dim must be divisible by num_heads"
    hd = D // num_heads
    scale = float(hd) ** -0.5

    tokens = (text_tokens[:, : (task_id + 1) * 10, :] if task_id > 0
              else text_tokens[:, :10, :])
    tok = tokens[0].astype(jnp.float32)          # (P, D) shared prompts (like .expand)
    P = tok.shape[0]

    # head-packed lane layout: per-head block of `slot` lanes, H*slot always lane-dense.
    if 128 % num_heads == 0 and P + 1 <= 128 // num_heads:
        slot = 128 // num_heads
    else:
        slot = pl.cdiv(P + 1, 128) * 128
    LB = num_heads * slot

    w5 = jnp.stack([W[0], W[1], W[5], W[6], W[7]]).astype(jnp.bfloat16)
    wqkv = jnp.concatenate([W[2] * scale, W[3], W[4] * scale],
                           axis=1).astype(jnp.bfloat16)                    # (D, 3D)
    b7 = jnp.stack([V[0], V[1], V[2], V[3], V[7], V[8], V[9]])             # (7, D)
    bqkv = jnp.concatenate([V[4] * scale, V[5], V[6] * scale])[None, :]    # (1, 3D)

    # prompt-token keys / values (constant across batch): project once here;
    # the post-softmax `* scale` of the source is folded into the values.
    k_tok = tok @ W[3] + V[5]                    # (P, D)
    v_tok = (tok @ W[4] + V[6]) * scale          # (P, D)

    k_bd = jnp.zeros((D, LB), jnp.float32)
    v_bd = jnp.zeros((LB, D), jnp.float32)
    for h in range(num_heads):
        k_bd = k_bd.at[h * hd:(h + 1) * hd, h * slot:h * slot + P].set(
            k_tok[:, h * hd:(h + 1) * hd].T)
        v_bd = v_bd.at[h * slot:h * slot + P, h * hd:(h + 1) * hd].set(
            v_tok[:, h * hd:(h + 1) * hd])

    return {
        "W5": w5, "Wqkv": wqkv,
        "Kbd": k_bd.astype(jnp.bfloat16), "Vbd": v_bd.astype(jnp.bfloat16),
        "B7": b7, "Bqkv": bqkv,
        "n_tok": int(P), "slot": int(slot), "num_heads": int(num_heads), "D": int(D),
    }


# ------------------------------- wrapper -------------------------------------

def apg_forward(img_feat, prep, *, tb=256):
    """img_feat: (B, 1, D); prep: output of prepare_apg_params."""
    B, N, D = img_feat.shape
    assert N == 1 and D == prep["D"]
    H, slot, P = prep["num_heads"], prep["slot"], prep["n_tok"]
    LB = H * slot
    kv = P + 1

    # Batch tiling: large sublane-aligned tiles; keep >=2 grid steps when the batch
    # allows so dimension_semantics=("parallel",) uses both TensorCores on v7x.
    b8 = _round_up(B, 8)
    n_tiles = max(1, pl.cdiv(b8, tb))
    if n_tiles == 1 and b8 >= 16:
        n_tiles = 2
    tb_eff = _round_up(pl.cdiv(b8, n_tiles), 8)
    b_pad = tb_eff * n_tiles

    x2d = img_feat[:, 0, :].astype(jnp.float32)
    if b_pad != B:
        x2d = jnp.concatenate([x2d, jnp.zeros((b_pad - B, D), jnp.float32)], axis=0)

    # VMEM budget from the actual buffer footprint (double-buffered) + intermediate slack.
    resident = ((prep["W5"].size + prep["Wqkv"].size + prep["Kbd"].size
                 + prep["Vbd"].size) * 2
                + (prep["B7"].size + prep["Bqkv"].size) * 4)
    per_tile = tb_eff * (2 * D + LB) * 4
    est = 2 * (resident + per_tile) + 16 * tb_eff * max(3 * D, LB) * 4
    vmem_limit = int(min(100 << 20, max(16 << 20, 2 * est)))

    kernel = functools.partial(apg_kernel, num_heads=H, n_tok=P, slot=slot)
    e2d, attn2d = pl.pallas_call(
        kernel,
        out_shape=(
            jax.ShapeDtypeStruct((b_pad, D), jnp.float32),     # e_prompt rows
            jax.ShapeDtypeStruct((b_pad, LB), jnp.float32),    # raw attn, head-packed lanes
        ),
        grid_spec=pltpu.PrefetchScalarGridSpec(
            num_scalar_prefetch=0,
            grid=(n_tiles,),
            in_specs=[
                pl.BlockSpec((tb_eff, D), lambda i: (i, 0)),       # img rows per grid step
                pl.BlockSpec((5, D, D), lambda i: (0, 0, 0)),      # weight stack (resident)
                pl.BlockSpec((D, 3 * D), lambda i: (0, 0)),        # fused QKV weight
                pl.BlockSpec((D, LB), lambda i: (0, 0)),           # block-diag token keys
                pl.BlockSpec((LB, D), lambda i: (0, 0)),           # block-diag token values
                pl.BlockSpec((7, D), lambda i: (0, 0)),            # biases / LN params
                pl.BlockSpec((1, 3 * D), lambda i: (0, 0)),        # fused QKV bias
            ],
            out_specs=(
                pl.BlockSpec((tb_eff, D), lambda i: (i, 0)),
                pl.BlockSpec((tb_eff, LB), lambda i: (i, 0)),
            ),
        ),
        compiler_params=pltpu.CompilerParams(
            dimension_semantics=("parallel",),     # batch tiles independent -> 2 TCs on v7x
            vmem_limit_bytes=vmem_limit,
        ),
    )(x2d, prep["W5"], prep["Wqkv"], prep["Kbd"], prep["Vbd"],
      prep["B7"], prep["Bqkv"])

    attn = attn2d[:B].reshape(B, H, slot)[:, :, :kv]           # [x, tok_0..tok_{P-1}]
    return {"e_prompt": e2d[:B][:, None, :], "attn": attn[:, :, None, :]}


def init_params(key, D):
    """Deterministic synthetic params (Linear weights ~ normal(std=0.02); non-zero
    biases/LN params so the bias and scale-folding paths are actually exercised)."""
    ks = jax.random.split(key, 10)
    W = jnp.stack([0.02 * jax.random.normal(ks[i], (D, D), jnp.float32)
                   for i in range(8)])
    V = 0.02 * jax.random.normal(ks[8], (10, D), jnp.float32)
    V = V.at[2].set(1.0 + 0.02 * jax.random.normal(ks[9], (D,), jnp.float32))  # norm3 gamma
    return {"W": W, "V": V}


# -------------------------- pure-JAX reference --------------------------------

def apg_reference(img_feat, text_tokens, params, *, task_id=0, num_heads=4):
    W, V = params["W"], params["V"]
    B, _, D = img_feat.shape
    hd = D // num_heads
    scale = float(hd) ** -0.5
    tokens = (text_tokens[:, : (task_id + 1) * 10, :] if task_id > 0
              else text_tokens[:, :10, :])
    P = tokens.shape[1]
    x = img_feat[:, 0, :]
    lin = lambda h, wi, bi: h @ W[wi] + V[bi]

    q = lin(jax.nn.gelu(lin(x, 0, 0), approximate=True), 1, 1)
    mu = q.mean(-1, keepdims=True)
    var = ((q - mu) ** 2).mean(-1, keepdims=True)
    q_new = (q - mu) / jnp.sqrt(var + 1e-5) * V[2] + V[3]

    xp = jnp.concatenate(
        [q_new[:, None, :], jnp.broadcast_to(tokens[0][None], (B, P, D))], axis=1)
    qh = (lin(q_new, 2, 4) * scale).reshape(B, num_heads, hd)
    kh = lin(xp, 3, 5).reshape(B, P + 1, num_heads, hd).transpose(0, 2, 1, 3)
    vh = lin(xp, 4, 6).reshape(B, P + 1, num_heads, hd).transpose(0, 2, 1, 3)
    logits = jnp.einsum("bhd,bhkd->bhk", qh, kh)
    a = jax.nn.softmax(logits, axis=-1) * scale
    ctx = jnp.einsum("bhk,bhkd->bhd", a, vh).reshape(B, D)
    x_cls = lin(ctx, 5, 7) + q_new
    e = lin(jax.nn.gelu(lin(x_cls, 6, 8), approximate=True), 7, 9)
    return {"e_prompt": e[:, None, :], "attn": logits[:, :, None, :]}


# --------------------------------- main ---------------------------------------

if __name__ == "__main__":
    key = jax.random.PRNGKey(0)
    B, D, H, T = 2, 32, 4, 20          # embedding_dim=32, num_heads=4, 2 tasks of 10 tokens
    k1, k2, k3 = jax.random.split(key, 3)
    img_feat = jax.random.normal(k1, (B, 1, D), jnp.float32)
    text_tokens = 0.02 * jax.random.normal(k2, (1, T, D), jnp.float32)
    params = init_params(k3, D)

    prep = prepare_apg_params(params, text_tokens, task_id=0, num_heads=H)

    out = jax.block_until_ready(apg_forward(img_feat, prep))
    assert out["e_prompt"].shape == (B, 1, D)
    assert out["attn"].shape == (B, H, 1, 11)

    ref = apg_reference(img_feat, text_tokens, params, task_id=0, num_heads=H)
    err_e = float(jnp.max(jnp.abs(out["e_prompt"] - ref["e_prompt"])))
    err_a = float(jnp.max(jnp.abs(out["attn"] - ref["attn"])))
    # tolerance accounts for bf16 MXU operands + approximate reciprocal in the softmax
    assert err_e < 1e-2 and err_a < 1e-2, (err_e, err_a)

    # second check: multi-tile grid (>=2 "parallel" steps) + batch-padding path
    B2 = 40
    img2 = jax.random.normal(jax.random.PRNGKey(1), (B2, 1, D), jnp.float32)
    out2 = jax.block_until_ready(apg_forward(img2, prep))
    ref2 = apg_reference(img2, text_tokens, params, task_id=0, num_heads=H)
    err2 = max(float(jnp.max(jnp.abs(out2["e_prompt"] - ref2["e_prompt"]))),
               float(jnp.max(jnp.abs(out2["attn"] - ref2["attn"]))))
    assert out2["e_prompt"].shape == (B2, 1, D) and out2["attn"].shape == (B2, H, 1, 11)
    assert err2 < 1e-2, err2

    print("KERNEL_OK")
</pallas_src>

<mosaic_0001>
module attributes {stable_mosaic.version = 11 : i64} {
  func.func @apg_kernel(%arg0: i32, %arg1: memref<8x32xf32, #tpu.memory_space<vmem>>, %arg2: memref<5x32x32xbf16, #tpu.memory_space<vmem>>, %arg3: memref<32x96xbf16, #tpu.memory_space<vmem>>, %arg4: memref<32x128xbf16, #tpu.memory_space<vmem>>, %arg5: memref<128x32xbf16, #tpu.memory_space<vmem>>, %arg6: memref<7x32xf32, #tpu.memory_space<vmem>>, %arg7: memref<1x96xf32, #tpu.memory_space<vmem>>, %arg8: memref<8x32xf32, #tpu.memory_space<vmem>>, %arg9: memref<8x128xf32, #tpu.memory_space<vmem>>) attributes {dimension_semantics = [#tpu.dimension_semantics<parallel>], iteration_bounds = array<i64: 1>, scalar_prefetch = 0 : i64, scratch_operands = 0 : i64, tpu.core_type = #tpu.core_type<tc>, window_params = [{transform_indices = @transform_0, window_bounds = array<i64: 8, 32>}, {pipeline_mode = #tpu.pipeline_mode<synchronous>, transform_indices = @transform_1, window_bounds = array<i64: 5, 32, 32>}, {pipeline_mode = #tpu.pipeline_mode<synchronous>, transform_indices = @transform_2, window_bounds = array<i64: 32, 96>}, {pipeline_mode = #tpu.pipeline_mode<synchronous>, transform_indices = @transform_3, window_bounds = array<i64: 32, 128>}, {pipeline_mode = #tpu.pipeline_mode<synchronous>, transform_indices = @transform_4, window_bounds = array<i64: 128, 32>}, {pipeline_mode = #tpu.pipeline_mode<synchronous>, transform_indices = @transform_5, window_bounds = array<i64: 7, 32>}, {pipeline_mode = #tpu.pipeline_mode<synchronous>, transform_indices = @transform_6, window_bounds = array<i64: 1, 96>}, {transform_indices = @transform_7, window_bounds = array<i64: 8, 32>}, {transform_indices = @transform_8, window_bounds = array<i64: 8, 128>}]} {
    %c0 = arith.constant 0 : index
    %c0_0 = arith.constant 0 : index
    %0 = vector.load %arg1[%c0, %c0_0] : memref<8x32xf32, #tpu.memory_space<vmem>>, vector<8x32xf32>
    %1 = arith.truncf %0 : vector<8x32xf32> to vector<8x32xbf16>
    %c0_1 = arith.constant 0 : index
    %c0_2 = arith.constant 0 : index
    %c0_3 = arith.constant 0 : index
    %2 = vector.load %arg2[%c0_1, %c0_2, %c0_3] : memref<5x32x32xbf16, #tpu.memory_space<vmem>>, vector<1x32x32xbf16>
    %3 = vector.shape_cast %2 : vector<1x32x32xbf16> to vector<32x32xbf16>
    %cst = arith.constant dense<0.000000e+00> : vector<8x32xf32>
    %4 = tpu.matmul %1, %3, %cst {dimension_numbers = #tpu.dot_dimension_numbers<[1], [0], [0], [1], [0, 0, 1, 1], [], []>} : vector<8x32xbf16>, vector<32x32xbf16>, vector<8x32xf32> -> vector<8x32xf32>
    %c0_4 = arith.constant 0 : index
    %c0_5 = arith.constant 0 : index
    %5 = vector.load %arg6[%c0_4, %c0_5] : memref<7x32xf32, #tpu.memory_space<vmem>>, vector<1x32xf32>
    %6 = vector.shape_cast %5 : vector<1x32xf32> to vector<32xf32>
    %7 = vector.shape_cast %6 : vector<32xf32> to vector<1x32xf32>
    %8 = vector.broadcast %7 : vector<1x32xf32> to vector<8x32xf32>
    %9 = arith.addf %4, %8 : vector<8x32xf32>
    %10 = arith.mulf %9, %9 : vector<8x32xf32>
    %11 = arith.mulf %9, %10 : vector<8x32xf32>
    %cst_6 = arith.constant 4.471500e-02 : f32
    %12 = vector.broadcast %cst_6 : f32 to vector<8x32xf32>
    %13 = arith.mulf %12, %11 : vector<8x32xf32>
    %14 = arith.addf %9, %13 : vector<8x32xf32>
    %cst_7 = arith.constant 0.797884583 : f32
    %15 = vector.broadcast %cst_7 : f32 to vector<8x32xf32>
    %16 = arith.mulf %15, %14 : vector<8x32xf32>
    %17 = math.tanh %16 : vector<8x32xf32>
    %cst_8 = arith.constant 1.000000e+00 : f32
    %18 = vector.broadcast %cst_8 : f32 to vector<8x32xf32>
    %19 = arith.addf %18, %17 : vector<8x32xf32>
    %cst_9 = arith.constant 5.000000e-01 : f32
    %20 = vector.broadcast %cst_9 : f32 to vector<8x32xf32>
    %21 = arith.mulf %20, %19 : vector<8x32xf32>
    %22 = arith.mulf %9, %21 : vector<8x32xf32>
    %23 = arith.truncf %22 : vector<8x32xf32> to vector<8x32xbf16>
    %c1 = arith.constant 1 : index
    %c0_10 = arith.constant 0 : index
    %c0_11 = arith.constant 0 : index
    %24 = vector.load %arg2[%c1, %c0_10, %c0_11] : memref<5x32x32xbf16, #tpu.memory_space<vmem>>, vector<1x32x32xbf16>
    %25 = vector.shape_cast %24 : vector<1x32x32xbf16> to vector<32x32xbf16>
    %cst_12 = arith.constant dense<0.000000e+00> : vector<8x32xf32>
    %26 = tpu.matmul %23, %25, %cst_12 {dimension_numbers = #tpu.dot_dimension_numbers<[1], [0], [0], [1], [0, 0, 1, 1], [], []>} : vector<8x32xbf16>, vector<32x32xbf16>, vector<8x32xf32> -> vector<8x32xf32>
    %c1_13 = arith.constant 1 : index
    %c0_14 = arith.constant 0 : index
    %27 = vector.load %arg6[%c1_13, %c0_14] : memref<7x32xf32, #tpu.memory_space<vmem>>, vector<1x32xf32>
    %28 = vector.shape_cast %27 : vector<1x32xf32> to vector<32xf32>
    %29 = vector.shape_cast %28 : vector<32xf32> to vector<1x32xf32>
    %30 = vector.broadcast %29 : vector<1x32xf32> to vector<8x32xf32>
    %31 = arith.addf %26, %30 : vector<8x32xf32>
    %c2 = arith.constant 2 : index
    %c0_15 = arith.constant 0 : index
    %32 = vector.load %arg6[%c2, %c0_15] : memref<7x32xf32, #tpu.memory_space<vmem>>, vector<1x32xf32>
    %33 = vector.shape_cast %32 : vector<1x32xf32> to vector<32xf32>
    %c3 = arith.constant 3 : index
    %c0_16 = arith.constant 0 : index
    %34 = vector.load %arg6[%c3, %c0_16] : memref<7x32xf32, #tpu.memory_space<vmem>>, vector<1x32xf32>
    %35 = vector.shape_cast %34 : vector<1x32xf32> to vector<32xf32>
    %cst_17 = arith.constant dense<0.000000e+00> : vector<8xf32>
    %36 = vector.multi_reduction <add>, %31, %cst_17 [1] : vector<8x32xf32> to vector<8xf32>
    %37 = vector.shape_cast %36 : vector<8xf32> to vector<8x1xf32>
    %cst_18 = arith.constant 3.200000e+01 : f32
    %38 = vector.broadcast %cst_18 : f32 to vector<8x1xf32>
    %39 = arith.divf %37, %38 : vector<8x1xf32>
    %40 = vector.broadcast %39 : vector<8x1xf32> to vector<8x32xf32>
    %41 = arith.subf %31, %40 : vector<8x32xf32>
    %42 = arith.mulf %41, %41 : vector<8x32xf32>
    %cst_19 = arith.constant dense<0.000000e+00> : vector<8xf32>
    %43 = vector.multi_reduction <add>, %42, %cst_19 [1] : vector<8x32xf32> to vector<8xf32>
    %44 = vector.shape_cast %43 : vector<8xf32> to vector<8x1xf32>
    %cst_20 = arith.constant 3.200000e+01 : f32
    %45 = vector.broadcast %cst_20 : f32 to vector<8x1xf32>
    %46 = arith.divf %44, %45 : vector<8x1xf32>
    %47 = vector.broadcast %39 : vector<8x1xf32> to vector<8x32xf32>
    %48 = arith.subf %31, %47 : vector<8x32xf32>
    %cst_21 = arith.constant 9.99999974E-6 : f32
    %49 = vector.broadcast %cst_21 : f32 to vector<8x1xf32>
    %50 = arith.addf %46, %49 : vector<8x1xf32>
    %51 = math.rsqrt %50 : vector<8x1xf32>
    %52 = vector.broadcast %51 : vector<8x1xf32> to vector<8x32xf32>
    %53 = arith.mulf %48, %52 : vector<8x32xf32>
    %54 = vector.shape_cast %33 : vector<32xf32> to vector<1x32xf32>
    %55 = vector.broadcast %54 : vector<1x32xf32> to vector<8x32xf32>
    %56 = arith.mulf %53, %55 : vector<8x32xf32>
    %57 = vector.shape_cast %35 : vector<32xf32> to vector<1x32xf32>
    %58 = vector.broadcast %57 : vector<1x32xf32> to vector<8x32xf32>
    %59 = arith.addf %56, %58 : vector<8x32xf32>
    %60 = arith.truncf %59 : vector<8x32xf32> to vector<8x32xbf16>
    %c0_22 = arith.constant 0 : index
    %c0_23 = arith.constant 0 : index
    %61 = vector.load %arg3[%c0_22, %c0_23] : memref<32x96xbf16, #tpu.memory_space<vmem>>, vector<32x96xbf16>
    %cst_24 = arith.constant dense<0.000000e+00> : vector<8x96xf32>
    %62 = tpu.matmul %60, %61, %cst_24 {dimension_numbers = #tpu.dot_dimension_numbers<[1], [0], [0], [1], [0, 0, 1, 1], [], []>} : vector<8x32xbf16>, vector<32x96xbf16>, vector<8x96xf32> -> vector<8x96xf32>
    %c0_25 = arith.constant 0 : index
    %c0_26 = arith.constant 0 : index
    %63 = vector.load %arg7[%c0_25, %c0_26] : memref<1x96xf32, #tpu.memory_space<vmem>>, vector<1x96xf32>
    %64 = vector.broadcast %63 : vector<1x96xf32> to vector<8x96xf32>
    %65 = arith.addf %62, %64 : vector<8x96xf32>
    %66 = vector.extract_strided_slice %65 {offsets = [0, 0], sizes = [8, 32], strides = [1, 1]} : vector<8x96xf32> to vector<8x32xf32>
    %67 = vector.extract_strided_slice %65 {offsets = [0, 32], sizes = [8, 32], strides = [1, 1]} : vector<8x96xf32> to vector<8x32xf32>
    %68 = vector.extract_strided_slice %65 {offsets = [0, 64], sizes = [8, 32], strides = [1, 1]} : vector<8x96xf32> to vector<8x32xf32>
    %69 = arith.truncf %66 : vector<8x32xf32> to vector<8x32xbf16>
    %c0_27 = arith.constant 0 : index
    %c0_28 = arith.constant 0 : index
    %70 = vector.load %arg4[%c0_27, %c0_28] : memref<32x128xbf16, #tpu.memory_space<vmem>>, vector<32x128xbf16>
    %cst_29 = arith.constant dense<0.000000e+00> : vector<8x128xf32>
    %71 = tpu.matmul %69, %70, %cst_29 {dimension_numbers = #tpu.dot_dimension_numbers<[1], [0], [0], [1], [0, 0, 1, 1], [], []>} : vector<8x32xbf16>, vector<32x128xbf16>, vector<8x128xf32> -> vector<8x128xf32>
    %72 = arith.mulf %66, %67 : vector<8x32xf32>
    %cst_30 = arith.constant 0.000000e+00 : f32
    %73 = vector.broadcast %cst_30 : f32 to vector<8x22xf32>
    %74 = vector.extract_strided_slice %72 {offsets = [0, 0], sizes = [8, 8], strides = [1, 1]} : vector<8x32xf32> to vector<8x8xf32>
    %cst_31 = arith.constant dense<0.000000e+00> : vector<8xf32>
    %75 = vector.multi_reduction <add>, %74, %cst_31 [1] : vector<8x8xf32> to vector<8xf32>
    %76 = vector.shape_cast %75 : vector<8xf32> to vector<8x1xf32>
    %77 = vector.extract_strided_slice %71 {offsets = [0, 0], sizes = [8, 10], strides = [1, 1]} : vector<8x128xf32> to vector<8x10xf32>
    %cst_32 = arith.constant dense<0xFF800000> : vector<8xf32>
    %78 = vector.multi_reduction <maximumf>, %77, %cst_32 [1] : vector<8x10xf32> to vector<8xf32>
    %79 = vector.shape_cast %78 : vector<8xf32> to vector<8x1xf32>
    %80 = arith.maximumf %79, %76 : vector<8x1xf32>
    %81 = arith.subf %76, %80 : vector<8x1xf32>
    %82 = math.exp %81 : vector<8x1xf32>
    %83 = vector.broadcast %80 : vector<8x1xf32> to vector<8x10xf32>
    %84 = arith.subf %77, %83 : vector<8x10xf32>
    %85 = math.exp %84 : vector<8x10xf32>
    %cst_33 = arith.constant dense<0.000000e+00> : vector<8xf32>
    %86 = vector.multi_reduction <add>, %85, %cst_33 [1] : vector<8x10xf32> to vector<8xf32>
    %87 = vector.shape_cast %86 : vector<8xf32> to vector<8x1xf32>
    %88 = arith.addf %82, %87 : vector<8x1xf32>
    %89 = tpu.reciprocal %88 {approx = true} : vector<8x1xf32> -> vector<8x1xf32>
    %90 = arith.mulf %82, %89 : vector<8x1xf32>
    %91 = vector.extract_strided_slice %68 {offsets = [0, 0], sizes = [8, 8], strides = [1, 1]} : vector<8x32xf32> to vector<8x8xf32>
    %92 = vector.broadcast %90 : vector<8x1xf32> to vector<8x8xf32>
    %93 = arith.mulf %92, %91 : vector<8x8xf32>
    %94 = vector.broadcast %89 : vector<8x1xf32> to vector<8x10xf32>
    %95 = arith.mulf %85, %94 : vector<8x10xf32>
    %96 = vector.extract_strided_slice %71 {offsets = [0, 0], sizes = [8, 31], strides = [1, 1]} : vector<8x128xf32> to vector<8x31xf32>
    %97 = vector.extract_strided_slice %72 {offsets = [0, 8], sizes = [8, 8], strides = [1, 1]} : vector<8x32xf32> to vector<8x8xf32>
    %cst_34 = arith.constant dense<0.000000e+00> : vector<8xf32>
    %98 = vector.multi_reduction <add>, %97, %cst_34 [1] : vector<8x8xf32> to vector<8xf32>
    %99 = vector.shape_cast %98 : vector<8xf32> to vector<8x1xf32>
    %100 = vector.extract_strided_slice %71 {offsets = [0, 32], sizes = [8, 10], strides = [1, 1]} : vector<8x128xf32> to vector<8x10xf32>
    %cst_35 = arith.constant dense<0xFF800000> : vector<8xf32>
    %101 = vector.multi_reduction <maximumf>, %100, %cst_35 [1] : vector<8x10xf32> to vector<8xf32>
    %102 = vector.shape_cast %101 : vector<8xf32> to vector<8x1xf32>
    %103 = arith.maximumf %102, %99 : vector<8x1xf32>
    %104 = arith.subf %99, %103 : vector<8x1xf32>
    %105 = math.exp %104 : vector<8x1xf32>
    %106 = vector.broadcast %103 : vector<8x1xf32> to vector<8x10xf32>
    %107 = arith.subf %100, %106 : vector<8x10xf32>
    %108 = math.exp %107 : vector<8x10xf32>
    %cst_36 = arith.constant dense<0.000000e+00> : vector<8xf32>
    %109 = vector.multi_reduction <add>, %108, %cst_36 [1] : vector<8x10xf32> to vector<8xf32>
    %110 = vector.shape_cast %109 : vector<8xf32> to vector<8x1xf32>
    %111 = arith.addf %105, %110 : vector<8x1xf32>
    %112 = tpu.reciprocal %111 {approx = true} : vector<8x1xf32> -> vector<8x1xf32>
    %113 = arith.mulf %105, %112 : vector<8x1xf32>
    %114 = vector.extract_strided_slice %68 {offsets = [0, 8], sizes = [8, 8], strides = [1, 1]} : vector<8x32xf32> to vector<8x8xf32>
    %115 = vector.broadcast %113 : vector<8x1xf32> to vector<8x8xf32>
    %116 = arith.mulf %115, %114 : vector<8x8xf32>
    %117 = vector.broadcast %112 : vector<8x1xf32> to vector<8x10xf32>
    %118 = arith.mulf %108, %117 : vector<8x10xf32>
    %119 = vector.extract_strided_slice %71 {offsets = [0, 32], sizes = [8, 31], strides = [1, 1]} : vector<8x128xf32> to vector<8x31xf32>
    %120 = vector.extract_strided_slice %72 {offsets = [0, 16], sizes = [8, 8], strides = [1, 1]} : vector<8x32xf32> to vector<8x8xf32>
    %cst_37 = arith.constant dense<0.000000e+00> : vector<8xf32>
    %121 = vector.multi_reduction <add>, %120, %cst_37 [1] : vector<8x8xf32> to vector<8xf32>
    %122 = vector.shape_cast %121 : vector<8xf32> to vector<8x1xf32>
    %123 = vector.extract_strided_slice %71 {offsets = [0, 64], sizes = [8, 10], strides = [1, 1]} : vector<8x128xf32> to vector<8x10xf32>
    %cst_38 = arith.constant dense<0xFF800000> : vector<8xf32>
    %124 = vector.multi_reduction <maximumf>, %123, %cst_38 [1] : vector<8x10xf32> to vector<8xf32>
    %125 = vector.shape_cast %124 : vector<8xf32> to vector<8x1xf32>
    %126 = arith.maximumf %125, %122 : vector<8x1xf32>
    %127 = arith.subf %122, %126 : vector<8x1xf32>
    %128 = math.exp %127 : vector<8x1xf32>
    %129 = vector.broadcast %126 : vector<8x1xf32> to vector<8x10xf32>
    %130 = arith.subf %123, %129 : vector<8x10xf32>
    %131 = math.exp %130 : vector<8x10xf32>
    %cst_39 = arith.constant dense<0.000000e+00> : vector<8xf32>
    %132 = vector.multi_reduction <add>, %131, %cst_39 [1] : vector<8x10xf32> to vector<8xf32>
    %133 = vector.shape_cast %132 : vector<8xf32> to vector<8x1xf32>
    %134 = arith.addf %128, %133 : vector<8x1xf32>
    %135 = tpu.reciprocal %134 {approx = true} : vector<8x1xf32> -> vector<8x1xf32>
    %136 = arith.mulf %128, %135 : vector<8x1xf32>
    %137 = vector.extract_strided_slice %68 {offsets = [0, 16], sizes = [8, 8], strides = [1, 1]} : vector<8x32xf32> to vector<8x8xf32>
    %138 = vector.broadcast %136 : vector<8x1xf32> to vector<8x8xf32>
    %139 = arith.mulf %138, %137 : vector<8x8xf32>
    %140 = vector.broadcast %135 : vector<8x1xf32> to vector<8x10xf32>
    %141 = arith.mulf %131, %140 : vector<8x10xf32>
    %142 = vector.extract_strided_slice %71 {offsets = [0, 64], sizes = [8, 31], strides = [1, 1]} : vector<8x128xf32> to vector<8x31xf32>
    %143 = vector.extract_strided_slice %72 {offsets = [0, 24], sizes = [8, 8], strides = [1, 1]} : vector<8x32xf32> to vector<8x8xf32>
    %cst_40 = arith.constant dense<0.000000e+00> : vector<8xf32>
    %144 = vector.multi_reduction <add>, %143, %cst_40 [1] : vector<8x8xf32> to vector<8xf32>
    %145 = vector.shape_cast %144 : vector<8xf32> to vector<8x1xf32>
    %146 = vector.extract_strided_slice %71 {offsets = [0, 96], sizes = [8, 10], strides = [1, 1]} : vector<8x128xf32> to vector<8x10xf32>
    %cst_41 = arith.constant dense<0xFF800000> : vector<8xf32>
    %147 = vector.multi_reduction <maximumf>, %146, %cst_41 [1] : vector<8x10xf32> to vector<8xf32>
    %148 = vector.shape_cast %147 : vector<8xf32> to vector<8x1xf32>
    %149 = arith.maximumf %148, %145 : vector<8x1xf32>
    %150 = arith.subf %145, %149 : vector<8x1xf32>
    %151 = math.exp %150 : vector<8x1xf32>
    %152 = vector.broadcast %149 : vector<8x1xf32> to vector<8x10xf32>
    %153 = arith.subf %146, %152 : vector<8x10xf32>
    %154 = math.exp %153 : vector<8x10xf32>
    %cst_42 = arith.constant dense<0.000000e+00> : vector<8xf32>
    %155 = vector.multi_reduction <add>, %154, %cst_42 [1] : vector<8x10xf32> to vector<8xf32>
    %156 = vector.shape_cast %155 : vector<8xf32> to vector<8x1xf32>
    %157 = arith.addf %151, %156 : vector<8x1xf32>
    %158 = tpu.reciprocal %157 {approx = true} : vector<8x1xf32> -> vector<8x1xf32>
    %159 = arith.mulf %151, %158 : vector<8x1xf32>
    %160 = vector.extract_strided_slice %68 {offsets = [0, 24], sizes = [8, 8], strides = [1, 1]} : vector<8x32xf32> to vector<8x8xf32>
    %161 = vector.broadcast %159 : vector<8x1xf32> to vector<8x8xf32>
    %162 = arith.mulf %161, %160 : vector<8x8xf32>
    %163 = vector.broadcast %158 : vector<8x1xf32> to vector<8x10xf32>
    %164 = arith.mulf %154, %163 : vector<8x10xf32>
    %165 = vector.extract_strided_slice %71 {offsets = [0, 96], sizes = [8, 31], strides = [1, 1]} : vector<8x128xf32> to vector<8x31xf32>
    %166 = tpu.concatenate %95, %73, %118, %73, %141, %73, %164, %73 in 1 : vector<8x10xf32>, vector<8x22xf32>, vector<8x10xf32>, vector<8x22xf32>, vector<8x10xf32>, vector<8x22xf32>, vector<8x10xf32>, vector<8x22xf32> -> vector<8x128xf32>
    %167 = tpu.concatenate %93, %116, %139, %162 in 1 : vector<8x8xf32>, vector<8x8xf32>, vector<8x8xf32>, vector<8x8xf32> -> vector<8x32xf32>
    %168 = arith.truncf %166 : vector<8x128xf32> to vector<8x128xbf16>
    %c0_43 = arith.constant 0 : index
    %c0_44 = arith.constant 0 : index
    %169 = vector.load %arg5[%c0_43, %c0_44] : memref<128x32xbf16, #tpu.memory_space<vmem>>, vector<128x32xbf16>
    %cst_45 = arith.constant dense<0.000000e+00> : vector<8x32xf32>
    %170 = tpu.matmul %168, %169, %cst_45 {dimension_numbers = #tpu.dot_dimension_numbers<[1], [0], [0], [1], [0, 0, 1, 1], [], []>} : vector<8x128xbf16>, vector<128x32xbf16>, vector<8x32xf32> -> vector<8x32xf32>
    %171 = arith.addf %167, %170 : vector<8x32xf32>
    %172 = arith.truncf %171 : vector<8x32xf32> to vector<8x32xbf16>
    %c2_46 = arith.constant 2 : index
    %c0_47 = arith.constant 0 : index
    %c0_48 = arith.constant 0 : index
    %173 = vector.load %arg2[%c2_46, %c0_47, %c0_48] : memref<5x32x32xbf16, #tpu.memory_space<vmem>>, vector<1x32x32xbf16>
    %174 = vector.shape_cast %173 : vector<1x32x32xbf16> to vector<32x32xbf16>
    %cst_49 = arith.constant dense<0.000000e+00> : vector<8x32xf32>
    %175 = tpu.matmul %172, %174, %cst_49 {dimension_numbers = #tpu.dot_dimension_numbers<[1], [0], [0], [1], [0, 0, 1, 1], [], []>} : vector<8x32xbf16>, vector<32x32xbf16>, vector<8x32xf32> -> vector<8x32xf32>
    %c4 = arith.constant 4 : index
    %c0_50 = arith.constant 0 : index
    %176 = vector.load %arg6[%c4, %c0_50] : memref<7x32xf32, #tpu.memory_space<vmem>>, vector<1x32xf32>
    %177 = vector.shape_cast %176 : vector<1x32xf32> to vector<32xf32>
    %178 = vector.shape_cast %177 : vector<32xf32> to vector<1x32xf32>
    %179 = vector.broadcast %178 : vector<1x32xf32> to vector<8x32xf32>
    %180 = arith.addf %175, %179 : vector<8x32xf32>
    %181 = arith.addf %59, %180 : vector<8x32xf32>
    %182 = arith.truncf %181 : vector<8x32xf32> to vector<8x32xbf16>
    %c3_51 = arith.constant 3 : index
    %c0_52 = arith.constant 0 : index
    %c0_53 = arith.constant 0 : index
    %183 = vector.load %arg2[%c3_51, %c0_52, %c0_53] : memref<5x32x32xbf16, #tpu.memory_space<vmem>>, vector<1x32x32xbf16>
    %184 = vector.shape_cast %183 : vector<1x32x32xbf16> to vector<32x32xbf16>
    %cst_54 = arith.constant dense<0.000000e+00> : vector<8x32xf32>
    %185 = tpu.matmul %182, %184, %cst_54 {dimension_numbers = #tpu.dot_dimension_numbers<[1], [0], [0], [1], [0, 0, 1, 1], [], []>} : vector<8x32xbf16>, vector<32x32xbf16>, vector<8x32xf32> -> vector<8x32xf32>
    %c5 = arith.constant 5 : index
    %c0_55 = arith.constant 0 : index
    %186 = vector.load %arg6[%c5, %c0_55] : memref<7x32xf32, #tpu.memory_space<vmem>>, vector<1x32xf32>
    %187 = vector.shape_cast %186 : vector<1x32xf32> to vector<32xf32>
    %188 = vector.shape_cast %187 : vector<32xf32> to vector<1x32xf32>
    %189 = vector.broadcast %188 : vector<1x32xf32> to vector<8x32xf32>
    %190 = arith.addf %185, %189 : vector<8x32xf32>
    %191 = arith.mulf %190, %190 : vector<8x32xf32>
    %192 = arith.mulf %190, %191 : vector<8x32xf32>
    %cst_56 = arith.constant 4.471500e-02 : f32
    %193 = vector.broadcast %cst_56 : f32 to vector<8x32xf32>
    %194 = arith.mulf %193, %192 : vector<8x32xf32>
    %195 = arith.addf %190, %194 : vector<8x32xf32>
    %cst_57 = arith.constant 0.797884583 : f32
    %196 = vector.broadcast %cst_57 : f32 to vector<8x32xf32>
    %197 = arith.mulf %196, %195 : vector<8x32xf32>
    %198 = math.tanh %197 : vector<8x32xf32>
    %cst_58 = arith.constant 1.000000e+00 : f32
    %199 = vector.broadcast %cst_58 : f32 to vector<8x32xf32>
    %200 = arith.addf %199, %198 : vector<8x32xf32>
    %cst_59 = arith.constant 5.000000e-01 : f32
    %201 = vector.broadcast %cst_59 : f32 to vector<8x32xf32>
    %202 = arith.mulf %201, %200 : vector<8x32xf32>
    %203 = arith.mulf %190, %202 : vector<8x32xf32>
    %204 = arith.truncf %203 : vector<8x32xf32> to vector<8x32xbf16>
    %c4_60 = arith.constant 4 : index
    %c0_61 = arith.constant 0 : index
    %c0_62 = arith.constant 0 : index
    %205 = vector.load %arg2[%c4_60, %c0_61, %c0_62] : memref<5x32x32xbf16, #tpu.memory_space<vmem>>, vector<1x32x32xbf16>
    %206 = vector.shape_cast %205 : vector<1x32x32xbf16> to vector<32x32xbf16>
    %cst_63 = arith.constant dense<0.000000e+00> : vector<8x32xf32>
    %207 = tpu.matmul %204, %206, %cst_63 {dimension_numbers = #tpu.dot_dimension_numbers<[1], [0], [0], [1], [0, 0, 1, 1], [], []>} : vector<8x32xbf16>, vector<32x32xbf16>, vector<8x32xf32> -> vector<8x32xf32>
    %c6 = arith.constant 6 : index
    %c0_64 = arith.constant 0 : index
    %208 = vector.load %arg6[%c6, %c0_64] : memref<7x32xf32, #tpu.memory_space<vmem>>, vector<1x32xf32>
    %209 = vector.shape_cast %208 : vector<1x32xf32> to vector<32xf32>
    %210 = vector.shape_cast %209 : vector<32xf32> to vector<1x32xf32>
    %211 = vector.broadcast %210 : vector<1x32xf32> to vector<8x32xf32>
    %212 = arith.addf %207, %211 : vector<8x32xf32>
    %c0_65 = arith.constant 0 : index
    %c0_66 = arith.constant 0 : index
    %213 = vector.load %arg8[%c0_65, %c0_66] : memref<8x32xf32, #tpu.memory_space<vmem>>, vector<8x32xf32>
    tpu.vector_store %arg8[%c0_65, %c0_66], %212 {strides = array<i32>} : memref<8x32xf32, #tpu.memory_space<vmem>>, vector<8x32xf32>,
    %214 = tpu.concatenate %76, %96, %99, %119, %122, %142, %145, %165 in 1 : vector<8x1xf32>, vector<8x31xf32>, vector<8x1xf32>, vector<8x31xf32>, vector<8x1xf32>, vector<8x31xf32>, vector<8x1xf32>, vector<8x31xf32> -> vector<8x128xf32>
    %c0_67 = arith.constant 0 : index
    %c0_68 = arith.constant 0 : index
    %215 = vector.load %arg9[%c0_67, %c0_68] : memref<8x128xf32, #tpu.memory_space<vmem>>, vector<8x128xf32>
    tpu.vector_store %arg9[%c0_67, %c0_68], %214 {strides = array<i32>} : memref<8x128xf32, #tpu.memory_space<vmem>>, vector<8x128xf32>,
    return
  }
  func.func @transform_0(%arg0: i32) -> (i32, i32) {
    %c0_i32 = arith.constant 0 : i32
    %c0_i32_0 = arith.constant 0 : i32
    return %arg0, %c0_i32 : i32, i32
  }
  func.func @transform_1(%arg0: i32) -> (i32, i32, i32) {
    %c0_i32 = arith.constant 0 : i32
    %c0_i32_0 = arith.constant 0 : i32
    %c0_i32_1 = arith.constant 0 : i32
    %c0_i32_2 = arith.constant 0 : i32
    return %c0_i32, %c0_i32_0, %c0_i32_1 : i32, i32, i32
  }
  func.func @transform_2(%arg0: i32) -> (i32, i32) {
    %c0_i32 = arith.constant 0 : i32
    %c0_i32_0 = arith.constant 0 : i32
    %c0_i32_1 = arith.constant 0 : i32
    return %c0_i32, %c0_i32_0 : i32, i32
  }
  func.func @transform_3(%arg0: i32) -> (i32, i32) {
    %c0_i32 = arith.constant 0 : i32
    %c0_i32_0 = arith.constant 0 : i32
    %c0_i32_1 = arith.constant 0 : i32
    return %c0_i32, %c0_i32_0 : i32, i32
  }
  func.func @transform_4(%arg0: i32) -> (i32, i32) {
    %c0_i32 = arith.constant 0 : i32
    %c0_i32_0 = arith.constant 0 : i32
    %c0_i32_1 = arith.constant 0 : i32
    return %c0_i32, %c0_i32_0 : i32, i32
  }
  func.func @transform_5(%arg0: i32) -> (i32, i32) {
    %c0_i32 = arith.constant 0 : i32
    %c0_i32_0 = arith.constant 0 : i32
    %c0_i32_1 = arith.constant 0 : i32
    return %c0_i32, %c0_i32_0 : i32, i32
  }
  func.func @transform_6(%arg0: i32) -> (i32, i32) {
    %c0_i32 = arith.constant 0 : i32
    %c0_i32_0 = arith.constant 0 : i32
    %c0_i32_1 = arith.constant 0 : i32
    return %c0_i32, %c0_i32_0 : i32, i32
  }
  func.func @transform_7(%arg0: i32) -> (i32, i32) {
    %c0_i32 = arith.constant 0 : i32
    %c0_i32_0 = arith.constant 0 : i32
    return %arg0, %c0_i32 : i32, i32
  }
  func.func @transform_8(%arg0: i32) -> (i32, i32) {
    %c0_i32 = arith.constant 0 : i32
    %c0_i32_0 = arith.constant 0 : i32
    return %arg0, %c0_i32 : i32, i32
  }
}

</mosaic_0001>

<llo_original>
// kernel: tpu_custom_call.1
$region0: #{tpu_custom_call.1}
  #allocation0 [shape = 'u32[]', space=smem, size = 0x4, offset = 0x4, fixed_abs, tag = 'smem constant byte address 0x4 - core index']
  #allocation1 [shape = 'u32[144,128]{1,0:T(1,128)}', space=vmem, size = 0x12000, scoped, tag = 'internal scratch']
  %s0 = inlined_call_operand.hbm [shape: f32[8,32], index: 0, kind: input, shape index: {}]
  %s1 = inlined_call_operand.vmem [shape: bf16[5,32,32], index: 1, kind: input, shape index: {}]
  %s2 = inlined_call_operand.hbm [shape: bf16[32,96], index: 2, kind: input, shape index: {}]
  %s3 = inlined_call_operand.hbm [shape: bf16[32,128], index: 3, kind: input, shape index: {}]
  %s4 = inlined_call_operand.vmem [shape: bf16[128,32], index: 4, kind: input, shape index: {}]
  %s5 = inlined_call_operand.vmem [shape: f32[7,32], index: 5, kind: input, shape index: {}]
  %s6 = inlined_call_operand.vmem [shape: f32[1,96], index: 6, kind: input, shape index: {}]
  %s7 = inlined_call_operand.hbm [shape: f32[8,32], index: 7, kind: output, shape index: {0}]
  %s8 = inlined_call_operand.hbm [shape: f32[8,128], index: 8, kind: output, shape index: {1}]
  %9 = xla_tuple %s7, %s8
  %s10 = sld [smem:[#allocation0]]
  $region58: #{tpu_custom_call.1} parent=0
    _
  %s12 = ssub.s32 1, %s10
  %s13 = scalar_select 0, %s12, %s10
  $region1: #{tpu_custom_call.1} parent=0
    #allocation2 [shape = 'u8[4096]{0}', space=vmem, size = 0x1000, scoped, tag = 'input window, operand 0, single buffered']
    #allocation3 [shape = 's32[1]{0}', space=sflag, size = 0x4, scoped, tag = 'scoped memory for tpu_custom_call.1']
    #allocation4 [shape = 's32[1]{0}', space=sflag, size = 0x4, scoped, tag = 'scoped memory for tpu_custom_call.1']
    #allocation5 [shape = 'u8[8192]{0}', space=vmem, size = 0x2000, scoped, tag = 'input window, operand 2, single buffered']
    #allocation6 [shape = 's32[1]{0}', space=sflag, size = 0x4, scoped, tag = 'scoped memory for tpu_custom_call.1']
    #allocation7 [shape = 'u8[8192]{0}', space=vmem, size = 0x2000, scoped, tag = 'input window, operand 3, single buffered']
    #allocation8 [shape = 'u8[4096]{0}', space=vmem, size = 0x1000, scoped, tag = 'output window, operand 0, single buffered']
    #allocation9 [shape = 'u8[4096]{0}', space=vmem, size = 0x1000, scoped, tag = 'output window, operand 1, single buffered']
    #allocation10 [shape = 's32[1]{0}', space=sflag, size = 0x4, scoped, tag = 'scoped memory for tpu_custom_call.1']
    %14 = vsyncpa [#allocation3], 0
    %15 = vsyncpa [#allocation6], 0
    %16 = vsyncpa [#allocation4], 0
    %17 = vsyncpa [#allocation10], 0
    // Predicated region
    $region2: #{tpu_custom_call.1} parent=1 // pred_check
      _
    $region3: #{tpu_custom_call.1} parent=1 // pred_check_branch
      %19 = sbr.rel (0) target = $region5
    $region4: #{tpu_custom_call.1} parent=1 // pred_region
      %s21 = ssub.s32 128, 128
      %22 = vsyncadd [#allocation3], %s21
      %s24 = sshll.u32 [#allocation2], 4
      %s25 = int_to_ptr.vmem [resolvable:$true] %s24
      %27 = dma.hbm_to_vmem [thread:$0]  %s0, 128, %s25, [#allocation3]
    $region5: #{tpu_custom_call.1} parent=1 // pred_fallthru
      _
    // Predicated region
    $region6: #{tpu_custom_call.1} parent=1 // pred_check
      _
    $region7: #{tpu_custom_call.1} parent=1 // pred_check_branch
      %29 = sbr.rel (0) target = $region9
    $region8: #{tpu_custom_call.1} parent=1 // pred_region
      _
    $region9: #{tpu_custom_call.1} parent=1 // pred_fallthru
      _
    // Predicated region
    $region10: #{tpu_custom_call.1} parent=1 // pred_check
      _
    $region11: #{tpu_custom_call.1} parent=1 // pred_check_branch
      %31 = sbr.rel (0) target = $region13
    $region12: #{tpu_custom_call.1} parent=1 // pred_region
      %s33 = ssub.s32 256, 256
      %34 = vsyncadd [#allocation6], %s33
      %s35 = sshll.u32 [#allocation5], 4
      %s36 = int_to_ptr.vmem [resolvable:$true] %s35
      %41 = dma.hbm_to_vmem [thread:$0]  %s2, 256, %s36, [#allocation6], 64, 64, 4
    $region13: #{tpu_custom_call.1} parent=1 // pred_fallthru
      _
    // Predicated region
    $region14: #{tpu_custom_call.1} parent=1 // pred_check
      _
    $region15: #{tpu_custom_call.1} parent=1 // pred_check_branch
      %43 = sbr.rel (0) target = $region17
    $region16: #{tpu_custom_call.1} parent=1 // pred_region
      %s45 = ssub.s32 256, 256
      %46 = vsyncadd [#allocation6], %s45
      %s47 = sshll.u32 [#allocation7], 4
      %s48 = int_to_ptr.vmem [resolvable:$true] %s47
      %53 = dma.hbm_to_vmem [thread:$0]  %s3, 256, %s48, [#allocation6], 64, 64, 4
    $region17: #{tpu_custom_call.1} parent=1 // pred_fallthru
      _
    // Predicated region
    $region18: #{tpu_custom_call.1} parent=1 // pred_check
      _
    $region19: #{tpu_custom_call.1} parent=1 // pred_check_branch
      %55 = sbr.rel (0) target = $region21
    $region20: #{tpu_custom_call.1} parent=1 // pred_region
      _
    $region21: #{tpu_custom_call.1} parent=1 // pred_fallthru
      _
    // Predicated region
    $region22: #{tpu_custom_call.1} parent=1 // pred_check
      _
    $region23: #{tpu_custom_call.1} parent=1 // pred_check_branch
      %57 = sbr.rel (0) target = $region25
    $region24: #{tpu_custom_call.1} parent=1 // pred_region
      _
    $region25: #{tpu_custom_call.1} parent=1 // pred_fallthru
      _
    // Predicated region
    $region26: #{tpu_custom_call.1} parent=1 // pred_check
      _
    $region27: #{tpu_custom_call.1} parent=1 // pred_check_branch
      %59 = sbr.rel (0) target = $region29
    $region28: #{tpu_custom_call.1} parent=1 // pred_region
      _
    $region29: #{tpu_custom_call.1} parent=1 // pred_fallthru
      _
    // Predicated region
    $region30: #{tpu_custom_call.1} parent=1 // pred_check
      _
    $region31: #{tpu_custom_call.1} parent=1 // pred_check_branch
      %61 = sbr.rel (0) target = $region33
    $region32: #{tpu_custom_call.1} parent=1 // pred_region
      %62 = dma.done [#allocation3], 128
    $region33: #{tpu_custom_call.1} parent=1 // pred_fallthru
      _
    // Predicated region
    $region34: #{tpu_custom_call.1} parent=1 // pred_check
      _
    $region35: #{tpu_custom_call.1} parent=1 // pred_check_branch
      %64 = sbr.rel (0) target = $region37
    $region36: #{tpu_custom_call.1} parent=1 // pred_region
      %65 = dma.done [#allocation6], 256
    $region37: #{tpu_custom_call.1} parent=1 // pred_fallthru
      _
    // Predicated region
    $region38: #{tpu_custom_call.1} parent=1 // pred_check
      _
    $region39: #{tpu_custom_call.1} parent=1 // pred_check_branch
      %67 = sbr.rel (0) target = $region41
    $region40: #{tpu_custom_call.1} parent=1 // pred_region
      %68 = dma.done [#allocation6], 256
    $region41: #{tpu_custom_call.1} parent=1 // pred_fallthru
      _
    %v70 = vld [vmem:[#allocation2] sm:$0xff]
    %v71 = vpack.c.bf16 %v70, %v70
    %v72 = vld [vmem:[%s1] sm:$0xf]
    %v73 = vld [vmem:[%s1 + $0x4] sm:$0xf]
    %v74 = vld [vmem:[%s1 + $0x8] sm:$0xf]
    %v75 = vld [vmem:[%s1 + $0xc] sm:$0xf]
    %v76 = vld [vmem:[%s5] sm:$0x1]
    %v77 = vlaneseq
    %v78 = vshrl.u32 %v77, 7
    %v79 = vsub.s32 0, %v78
    %v80 = vrot.slane %v76, %v79
    %v85 = vunpack.c.l.b16 %v72
    %v86 = vunpack.c.l.b16 %v73
    %v87 = vunpack.c.l.b16 %v74
    %v88 = vunpack.c.l.b16 %v75
    %v89 = vpack.c.b16 %v86, %v85
    %v90 = vpack.c.b16 %v88, %v87
    %vm93 = vcmask 261120
    %v95 = vsel %vm93, %v71, 0
    %97 = vmatprep.subr.bf16.mxu0 0
    %98 = vmatpush1.bf16.msra.mxu0 %v89
    %99 = vmatprep.subr.bf16.mxu0 0
    %100 = vmatpush1.bf16.msra.mxu0 %v90
    %101 = vmatprep.subr.bf16.mxu0 0
    %102 = vmatpush1.bf16.msra.mxu0 0
    %103 = vmatprep.subr.bf16.mxu0 0
    %104 = vmatpush1.bf16.msra.mxu0 0
    %105 = vmatprep.subr.bf16.mxu0 0
    %106 = vmatpush1.bf16.msra.mxu0 0
    %107 = vmatprep.subr.bf16.mxu0 0
    %108 = vmatpush1.bf16.msra.mxu0 0
    %109 = vmatprep.subr.bf16.mxu0 0
    %110 = vmatpush1.bf16.msra.mxu0 0
    %111 = vmatprep.subr.bf16.mxu0 0
    %112 = vmatpush1.bf16.msra.mxu0 0
    %113 = vmatprep.subr.bf16.mxu0 0
    %114 = vmatpush1.bf16.msra.mxu0 0
    %115 = vmatprep.subr.bf16.mxu0 0
    %116 = vmatpush1.bf16.msra.mxu0 0
    %117 = vmatprep.subr.bf16.mxu0 0
    %118 = vmatpush1.bf16.msra.mxu0 0
    %119 = vmatprep.subr.bf16.mxu0 0
    %120 = vmatpush1.bf16.msra.mxu0 0
    %121 = vmatprep.subr.bf16.mxu0 0
    %122 = vmatpush1.bf16.msra.mxu0 0
    %123 = vmatprep.subr.bf16.mxu0 0
    %124 = vmatpush1.bf16.msra.mxu0 0
    %125 = vmatprep.subr.bf16.mxu0 0
    %126 = vmatpush1.bf16.msra.mxu0 0
    %127 = vmatprep.subr.bf16.mxu0 0
    %128 = vmatpush1.bf16.msra.mxu0 0
    %129 = vmatprep.mubr.bf16.mxu0 0
    %130 = vmatmul.mubr.bf16.gmra.mrb[0].mxu0 %v95
    %v131 = vpop.f32.mrb[0].mxu0
    %v132 = vadd.f32 %v80, %v131
    %v133 = vpop.f32.mrb[0].mxu0
    %v134 = vpop.f32.mrb[0].mxu0
    %v135 = vpop.f32.mrb[0].mxu0
    %136 = vdwg.mxu0
    %v137 = vmul.f32 %v132, %v132
    %v138 = vmul.f32 %v132, %v137
    %v139 = vmul.f32 %v138, 0.044715
    %v140 = vadd.f32 %v132, %v139
    %v141 = vmul.f32 %v140, 0.7978846
    %v142 = vtanh.pop %v141
    %v143 = vadd.f32 %v142, 1.0
    %v144 = vmul.f32 %v143, 0.5
    %v145 = vmul.f32 %v132, %v144
    %v146 = vpack.c.bf16 %v145, %v145
    %s147 = scalar_lea.vmem %s1, 16
    %v148 = vld [vmem:[%s147] sm:$0xf]
    %v149 = vld [vmem:[%s147 + $0x4] sm:$0xf]
    %v150 = vld [vmem:[%s147 + $0x8] sm:$0xf]
    %v151 = vld [vmem:[%s147 + $0xc] sm:$0xf]
    %v152 = vld [vmem:[%s5 + $0x1] sm:$0x1]
    %v153 = vlaneseq
    %v154 = vshrl.u32 %v153, 7
    %v155 = vsub.s32 0, %v154
    %v156 = vrot.slane %v152, %v155
    %v161 = vunpack.c.l.b16 %v148
    %v162 = vunpack.c.l.b16 %v149
    %v163 = vunpack.c.l.b16 %v150
    %v164 = vunpack.c.l.b16 %v151
    %v165 = vpack.c.b16 %v162, %v161
    %v166 = vpack.c.b16 %v164, %v163
    %v170 = vsel %vm93, %v146, 0
    %172 = vmatprep.subr.bf16.mxu0 0
    %173 = vmatpush1.bf16.msra.mxu0 %v165
    %174 = vmatprep.subr.bf16.mxu0 0
    %175 = vmatpush1.bf16.msra.mxu0 %v166
    %176 = vmatprep.subr.bf16.mxu0 0
    %177 = vmatpush1.bf16.msra.mxu0 0
    %178 = vmatprep.subr.bf16.mxu0 0
    %179 = vmatpush1.bf16.msra.mxu0 0
    %180 = vmatprep.subr.bf16.mxu0 0
    %181 = vmatpush1.bf16.msra.mxu0 0
    %182 = vmatprep.subr.bf16.mxu0 0
    %183 = vmatpush1.bf16.msra.mxu0 0
    %184 = vmatprep.subr.bf16.mxu0 0
    %185 = vmatpush1.bf16.msra.mxu0 0
    %186 = vmatprep.subr.bf16.mxu0 0
    %187 = vmatpush1.bf16.msra.mxu0 0
    %188 = vmatprep.subr.bf16.mxu0 0
    %189 = vmatpush1.bf16.msra.mxu0 0
    %190 = vmatprep.subr.bf16.mxu0 0
    %191 = vmatpush1.bf16.msra.mxu0 0
    %192 = vmatprep.subr.bf16.mxu0 0
    %193 = vmatpush1.bf16.msra.mxu0 0
    %194 = vmatprep.subr.bf16.mxu0 0
    %195 = vmatpush1.bf16.msra.mxu0 0
    %196 = vmatprep.subr.bf16.mxu0 0
    %197 = vmatpush1.bf16.msra.mxu0 0
    %198 = vmatprep.subr.bf16.mxu0 0
    %199 = vmatpush1.bf16.msra.mxu0 0
    %200 = vmatprep.subr.bf16.mxu0 0
    %201 = vmatpush1.bf16.msra.mxu0 0
    %202 = vmatprep.subr.bf16.mxu0 0
    %203 = vmatpush1.bf16.msra.mxu0 0
    %204 = vmatprep.mubr.bf16.mxu0 0
    %205 = vmatmul.mubr.bf16.gmra.mrb[0].mxu0 %v170
    %v206 = vpop.f32.mrb[0].mxu0
    %v207 = vadd.f32 %v156, %v206
    %v208 = vpop.f32.mrb[0].mxu0
    %v209 = vpop.f32.mrb[0].mxu0
    %v210 = vpop.f32.mrb[0].mxu0
    %211 = vdwg.mxu0
    %v212 = vld [vmem:[%s5 + $0x2] sm:$0x1]
    %v213 = vld [vmem:[%s5 + $0x3] sm:$0x1]
    %v214 = vsel %vm93, %v207, 0.0
    %215 = vadd.xlane.f32.xlu0 %v214
    %v216 = vpop.xlane.xlu0 %215
    %v217 = vrcp.pop 32.0
    %v218 = vmul.f32 %v216, %v217
    %v219 = vsub.f32 %v207, %v218
    %v220 = vmul.f32 %v219, %v219
    %v221 = vsel %vm93, %v220, 0.0
    %222 = vadd.xlane.f32.xlu0 %v221
    %v223 = vpop.xlane.xlu0 %222
    %v224 = vmul.f32 %v223, %v217
    %v225 = vadd.f32 %v224, 1e-05
    %v226 = vrsqrt.pop %v225
    %v227 = vmul.f32 %v219, %v226
    %v228 = vlaneseq
    %v229 = vshrl.u32 %v228, 7
    %v230 = vsub.s32 0, %v229
    %v231 = vrot.slane %v212, %v230
    %v232 = vmul.f32 %v227, %v231
    %v233 = vlaneseq
    %v234 = vshrl.u32 %v233, 7
    %v235 = vsub.s32 0, %v234
    %v236 = vrot.slane %v213, %v235
    %v237 = vadd.f32 %v232, %v236
    %v238 = vpack.c.bf16 %v237, %v237
    %v239 = vld [vmem:[#allocation5] sm:$0xf]
    %v240 = vld [vmem:[#allocation5 + $0x4] sm:$0xf]
    %v241 = vld [vmem:[#allocation5 + $0x8] sm:$0xf]
    %v242 = vld [vmem:[#allocation5 + $0xc] sm:$0xf]
    %v243 = vld [vmem:[%s6] sm:$0x1]
    %v245 = vlaneseq
    %v246 = vshrl.u32 %v245, 7
    %v247 = vsub.s32 0, %v246
    %v248 = vrot.slane %v243, %v247
    %v254 = vunpack.c.l.b16 %v239
    %v255 = vunpack.c.l.b16 %v240
    %v256 = vunpack.c.l.b16 %v241
    %v257 = vunpack.c.l.b16 %v242
    %v258 = vpack.c.b16 %v255, %v254
    %v259 = vpack.c.b16 %v257, %v256
    %v263 = vsel %vm93, %v238, 0
    %265 = vmatprep.subr.bf16.mxu0 0
    %266 = vmatpush1.bf16.msra.mxu0 %v258
    %267 = vmatprep.subr.bf16.mxu0 0
    %268 = vmatpush1.bf16.msra.mxu0 %v259
    %269 = vmatprep.subr.bf16.mxu0 0
    %270 = vmatpush1.bf16.msra.mxu0 0
    %271 = vmatprep.subr.bf16.mxu0 0
    %272 = vmatpush1.bf16.msra.mxu0 0
    %273 = vmatprep.subr.bf16.mxu0 0
    %274 = vmatpush1.bf16.msra.mxu0 0
    %275 = vmatprep.subr.bf16.mxu0 0
    %276 = vmatpush1.bf16.msra.mxu0 0
    %277 = vmatprep.subr.bf16.mxu0 0
    %278 = vmatpush1.bf16.msra.mxu0 0
    %279 = vmatprep.subr.bf16.mxu0 0
    %280 = vmatpush1.bf16.msra.mxu0 0
    %281 = vmatprep.subr.bf16.mxu0 0
    %282 = vmatpush1.bf16.msra.mxu0 0
    %283 = vmatprep.subr.bf16.mxu0 0
    %284 = vmatpush1.bf16.msra.mxu0 0
    %285 = vmatprep.subr.bf16.mxu0 0
    %286 = vmatpush1.bf16.msra.mxu0 0
    %287 = vmatprep.subr.bf16.mxu0 0
    %288 = vmatpush1.bf16.msra.mxu0 0
    %289 = vmatprep.subr.bf16.mxu0 0
    %290 = vmatpush1.bf16.msra.mxu0 0
    %291 = vmatprep.subr.bf16.mxu0 0
    %292 = vmatpush1.bf16.msra.mxu0 0
    %293 = vmatprep.subr.bf16.mxu0 0
    %294 = vmatpush1.bf16.msra.mxu0 0
    %295 = vmatprep.subr.bf16.mxu0 0
    %296 = vmatpush1.bf16.msra.mxu0 0
    %297 = vmatprep.mubr.bf16.mxu0 0
    %298 = vmatmul.mubr.bf16.gmra.mrb[0].mxu0 %v263
    %v299 = vpop.f32.mrb[0].mxu0
    %v300 = vadd.f32 %v248, %v299
    %v301 = vpop.f32.mrb[0].mxu0
    %v302 = vpop.f32.mrb[0].mxu0
    %v303 = vpop.f32.mrb[0].mxu0
    %304 = vdwg.mxu0
    %v305 = vpack.c.bf16 %v300, %v300
    %v306 = vld [vmem:[#allocation7] sm:$0xf]
    %v307 = vld [vmem:[#allocation7 + $0x4] sm:$0xf]
    %v308 = vld [vmem:[#allocation7 + $0x8] sm:$0xf]
    %v309 = vld [vmem:[#allocation7 + $0xc] sm:$0xf]
    %v314 = vunpack.c.l.b16 %v306
    %v315 = vunpack.c.l.b16 %v307
    %v316 = vunpack.c.l.b16 %v308
    %v317 = vunpack.c.l.b16 %v309
    %v318 = vpack.c.b16 %v315, %v314
    %v319 = vpack.c.b16 %v317, %v316
    %v323 = vsel %vm93, %v305, 0
    %325 = vmatprep.subr.bf16.mxu0 0
    %326 = vmatpush1.bf16.msra.mxu0 %v318
    %327 = vmatprep.subr.bf16.mxu0 0
    %328 = vmatpush1.bf16.msra.mxu0 %v319
    %329 = vmatprep.subr.bf16.mxu0 0
    %330 = vmatpush1.bf16.msra.mxu0 0
    %331 = vmatprep.subr.bf16.mxu0 0
    %332 = vmatpush1.bf16.msra.mxu0 0
    %333 = vmatprep.subr.bf16.mxu0 0
    %334 = vmatpush1.bf16.msra.mxu0 0
    %335 = vmatprep.subr.bf16.mxu0 0
    %336 = vmatpush1.bf16.msra.mxu0 0
    %337 = vmatprep.subr.bf16.mxu0 0
    %338 = vmatpush1.bf16.msra.mxu0 0
    %339 = vmatprep.subr.bf16.mxu0 0
    %340 = vmatpush1.bf16.msra.mxu0 0
    %341 = vmatprep.subr.bf16.mxu0 0
    %342 = vmatpush1.bf16.msra.mxu0 0
    %343 = vmatprep.subr.bf16.mxu0 0
    %344 = vmatpush1.bf16.msra.mxu0 0
    %345 = vmatprep.subr.bf16.mxu0 0
    %346 = vmatpush1.bf16.msra.mxu0 0
    %347 = vmatprep.subr.bf16.mxu0 0
    %348 = vmatpush1.bf16.msra.mxu0 0
    %349 = vmatprep.subr.bf16.mxu0 0
    %350 = vmatpush1.bf16.msra.mxu0 0
    %351 = vmatprep.subr.bf16.mxu0 0
    %352 = vmatpush1.bf16.msra.mxu0 0
    %353 = vmatprep.subr.bf16.mxu0 0
    %354 = vmatpush1.bf16.msra.mxu0 0
    %355 = vmatprep.subr.bf16.mxu0 0
    %356 = vmatpush1.bf16.msra.mxu0 0
    %357 = vmatprep.mubr.bf16.mxu0 0
    %358 = vmatmul.mubr.bf16.gmra.mrb[0].mxu0 %v323
    %v359 = vpop.f32.mrb[0].mxu0
    %v360 = vadd.f32 0.0, %v359
    %v361 = vpop.f32.mrb[0].mxu0
    %v362 = vpop.f32.mrb[0].mxu0
    %v363 = vpop.f32.mrb[0].mxu0
    %364 = vdwg.mxu0
    %366 = vrot.lane.b32.xlu0 %v300, 96
    %v367 = vpop.permute.xlu0 %366
    %v369 = vmul.f32 %v300, %v367
    %vm370 = vcmask 64512
    %v371 = vsel %vm370, %v369, 0.0
    %372 = vadd.xlane.f32.xlu0 %v371
    %v373 = vpop.xlane.xlu0 %372
    %vm374 = vcmask 80896
    %v375 = vsel %vm374, %v360, -inf
    %376 = vmax.xlane.f32.xlu0 %v375
    %v377 = vpop.xlane.xlu0 %376
    %v378 = vmax.f32 %v377, %v373
    %v379 = vsub.f32 %v373, %v378
    %v380 = vmul.f32 %v379, 1.442695
    %v381 = vpow.pop %v380
    %v382 = vsub.f32 %v360, %v378
    %v383 = vmul.f32 %v382, 1.442695
    %v384 = vpow.pop %v383
    %v385 = vsel %vm374, %v384, 0.0
    %386 = vadd.xlane.f32.xlu0 %v385
    %v387 = vpop.xlane.xlu0 %386
    %v388 = vadd.f32 %v381, %v387
    %v389 = vrcp.pop %v388
    %v390 = vmul.f32 %v381, %v389
    %v391 = vmul.f32 %v390, %v300
    %v392 = vmul.f32 %v384, %v389
    %394 = vrot.lane.b32.xlu0 %v369, 120
    %v395 = vpop.permute.xlu0 %394
    %v397 = vsel %vm370, %v395, 0.0
    %398 = vadd.xlane.f32.xlu0 %v397
    %v399 = vpop.xlane.xlu0 %398
    %vm400 = vcmask 343296
    %v401 = vsel %vm400, %v360, -inf
    %402 = vmax.xlane.f32.xlu0 %v401
    %v403 = vpop.xlane.xlu0 %402
    %v404 = vmax.f32 %v403, %v399
    %v405 = vsub.f32 %v399, %v404
    %v406 = vmul.f32 %v405, 1.442695
    %v407 = vpow.pop %v406
    %v408 = vsub.f32 %v360, %v404
    %v409 = vmul.f32 %v408, 1.442695
    %v410 = vpow.pop %v409
    %412 = vrot.lane.b32.xlu0 %v410, 96
    %v413 = vpop.permute.xlu0 %412
    %v415 = vsel %vm374, %v413, 0.0
    %416 = vadd.xlane.f32.xlu0 %v415
    %v417 = vpop.xlane.xlu0 %416
    %v418 = vadd.f32 %v407, %v417
    %v419 = vrcp.pop %v418
    %v420 = vmul.f32 %v407, %v419
    %v421 = vmul.f32 %v420, %v300
    %v422 = vmul.f32 %v410, %v419
    %423 = vrot.lane.b32.xlu0 %v369, 112
    %v424 = vpop.permute.xlu0 %423
    %v426 = vsel %vm370, %v424, 0.0
    %427 = vadd.xlane.f32.xlu0 %v426
    %v428 = vpop.xlane.xlu0 %427
    %vm429 = vcmask 605696
    %v430 = vsel %vm429, %v360, -inf
    %431 = vmax.xlane.f32.xlu0 %v430
    %v432 = vpop.xlane.xlu0 %431
    %v433 = vmax.f32 %v432, %v428
    %v434 = vsub.f32 %v428, %v433
    %v435 = vmul.f32 %v434, 1.442695
    %v436 = vpow.pop %v435
    %v437 = vsub.f32 %v360, %v433
    %v438 = vmul.f32 %v437, 1.442695
    %v439 = vpow.pop %v438
    %441 = vrot.lane.b32.xlu0 %v439, 64
    %v442 = vpop.permute.xlu0 %441
    %v444 = vsel %vm374, %v442, 0.0
    %445 = vadd.xlane.f32.xlu0 %v444
    %v446 = vpop.xlane.xlu0 %445
    %v447 = vadd.f32 %v436, %v446
    %v448 = vrcp.pop %v447
    %v449 = vmul.f32 %v436, %v448
    %v450 = vmul.f32 %v449, %v300
    %v451 = vmul.f32 %v439, %v448
    %452 = vrot.lane.b32.xlu0 %v369, 104
    %v453 = vpop.permute.xlu0 %452
    %v455 = vsel %vm370, %v453, 0.0
    %456 = vadd.xlane.f32.xlu0 %v455
    %v457 = vpop.xlane.xlu0 %456
    %vm458 = vcmask 868096
    %v459 = vsel %vm458, %v360, -inf
    %460 = vmax.xlane.f32.xlu0 %v459
    %v461 = vpop.xlane.xlu0 %460
    %v462 = vmax.f32 %v461, %v457
    %v463 = vsub.f32 %v457, %v462
    %v464 = vmul.f32 %v463, 1.442695
    %v465 = vpow.pop %v464
    %v466 = vsub.f32 %v360, %v462
    %v467 = vmul.f32 %v466, 1.442695
    %v468 = vpow.pop %v467
    %470 = vrot.lane.b32.xlu0 %v468, 32
    %v471 = vpop.permute.xlu0 %470
    %v473 = vsel %vm374, %v471, 0.0
    %474 = vadd.xlane.f32.xlu0 %v473
    %v475 = vpop.xlane.xlu0 %474
    %v476 = vadd.f32 %v465, %v475
    %v477 = vrcp.pop %v476
    %v478 = vmul.f32 %v465, %v477
    %v479 = vmul.f32 %v478, %v300
    %v480 = vmul.f32 %v468, %v477
    %v481 = vsel %vm374, %v392, 0.0
    %v482 = vsel %vm93, %v481, %v422
    %vm483 = vcmask 343040
    %v484 = vsel %vm483, %v482, 0.0
    %vm485 = vcmask 523264
    %v486 = vsel %vm485, %v484, %v451
    %vm487 = vcmask 605184
    %v488 = vsel %vm487, %v486, 0.0
    %vm489 = vcmask 785408
    %v490 = vsel %vm489, %v488, %v480
    %vm491 = vcmask 867328
    %v492 = vsel %vm491, %v490, 0.0
    %494 = vrot.lane.b32.xlu0 %v391, 64
    %v495 = vpop.permute.xlu0 %494
    %498 = vrot.lane.b32.xlu0 %v421, 64
    %v499 = vpop.permute.xlu0 %498
    %502 = vrot.lane.b32.xlu0 %v450, 64
    %v503 = vpop.permute.xlu0 %502
    %506 = vrot.lane.b32.xlu0 %v479, 64
    %v507 = vpop.permute.xlu0 %506
    %v509 = vsel %vm370, %v495, %v499
    %vm510 = vcmask 130048
    %v511 = vsel %vm510, %v509, %v503
    %vm512 = vcmask 195584
    %v513 = vsel %vm512, %v511, %v507
    %v514 = vpack.c.bf16 %v492, %v492
    %v515 = vld [vmem:[%s4] sm:$0xf]
    %v516 = vld [vmem:[%s4 + $0x4] sm:$0xf]
    %v517 = vld [vmem:[%s4 + $0x8] sm:$0xf]
    %v518 = vld [vmem:[%s4 + $0xc] sm:$0xf]
    %v519 = vld [vmem:[%s4 + $0x10] sm:$0xf]
    %v520 = vld [vmem:[%s4 + $0x14] sm:$0xf]
    %v521 = vld [vmem:[%s4 + $0x18] sm:$0xf]
    %v522 = vld [vmem:[%s4 + $0x1c] sm:$0xf]
    %v523 = vld [vmem:[%s4 + $0x20] sm:$0xf]
    %v524 = vld [vmem:[%s4 + $0x24] sm:$0xf]
    %v525 = vld [vmem:[%s4 + $0x28] sm:$0xf]
    %v526 = vld [vmem:[%s4 + $0x2c] sm:$0xf]
    %v527 = vld [vmem:[%s4 + $0x30] sm:$0xf]
    %v528 = vld [vmem:[%s4 + $0x34] sm:$0xf]
    %v529 = vld [vmem:[%s4 + $0x38] sm:$0xf]
    %v530 = vld [vmem:[%s4 + $0x3c] sm:$0xf]
    %v547 = vunpack.c.l.b16 %v515
    %v548 = vunpack.c.l.b16 %v516
    %v549 = vunpack.c.l.b16 %v517
    %v550 = vunpack.c.l.b16 %v518
    %v551 = vunpack.c.l.b16 %v519
    %v552 = vunpack.c.l.b16 %v520
    %v553 = vunpack.c.l.b16 %v521
    %v554 = vunpack.c.l.b16 %v522
    %v555 = vunpack.c.l.b16 %v523
    %v556 = vunpack.c.l.b16 %v524
    %v557 = vunpack.c.l.b16 %v525
    %v558 = vunpack.c.l.b16 %v526
    %v559 = vunpack.c.l.b16 %v527
    %v560 = vunpack.c.l.b16 %v528
    %v561 = vunpack.c.l.b16 %v529
    %v562 = vunpack.c.l.b16 %v530
    %v563 = vpack.c.b16 %v548, %v547
    %v564 = vpack.c.b16 %v550, %v549
    %v565 = vpack.c.b16 %v552, %v551
    %v566 = vpack.c.b16 %v554, %v553
    %v567 = vpack.c.b16 %v556, %v555
    %v568 = vpack.c.b16 %v558, %v557
    %v569 = vpack.c.b16 %v560, %v559
    %v570 = vpack.c.b16 %v562, %v561
    %579 = vmatprep.subr.bf16.mxu0 0
    %580 = vmatpush1.bf16.msra.mxu0 %v563
    %581 = vmatprep.subr.bf16.mxu0 0
    %582 = vmatpush1.bf16.msra.mxu0 %v564
    %583 = vmatprep.subr.bf16.mxu0 0
    %584 = vmatpush1.bf16.msra.mxu0 %v565
    %585 = vmatprep.subr.bf16.mxu0 0
    %586 = vmatpush1.bf16.msra.mxu0 %v566
    %587 = vmatprep.subr.bf16.mxu0 0
    %588 = vmatpush1.bf16.msra.mxu0 %v567
    %589 = vmatprep.subr.bf16.mxu0 0
    %590 = vmatpush1.bf16.msra.mxu0 %v568
    %591 = vmatprep.subr.bf16.mxu0 0
    %592 = vmatpush1.bf16.msra.mxu0 %v569
    %593 = vmatprep.subr.bf16.mxu0 0
    %594 = vmatpush1.bf16.msra.mxu0 %v570
    %595 = vmatprep.subr.bf16.mxu0 0
    %596 = vmatpush1.bf16.msra.mxu0 0
    %597 = vmatprep.subr.bf16.mxu0 0
    %598 = vmatpush1.bf16.msra.mxu0 0
    %599 = vmatprep.subr.bf16.mxu0 0
    %600 = vmatpush1.bf16.msra.mxu0 0
    %601 = vmatprep.subr.bf16.mxu0 0
    %602 = vmatpush1.bf16.msra.mxu0 0
    %603 = vmatprep.subr.bf16.mxu0 0
    %604 = vmatpush1.bf16.msra.mxu0 0
    %605 = vmatprep.subr.bf16.mxu0 0
    %606 = vmatpush1.bf16.msra.mxu0 0
    %607 = vmatprep.subr.bf16.mxu0 0
    %608 = vmatpush1.bf16.msra.mxu0 0
    %609 = vmatprep.subr.bf16.mxu0 0
    %610 = vmatpush1.bf16.msra.mxu0 0
    %611 = vmatprep.mubr.bf16.mxu0 0
    %612 = vmatmul.mubr.bf16.gmra.mrb[0].mxu0 %v514
    %v613 = vpop.f32.mrb[0].mxu0
    %v614 = vadd.f32 0.0, %v613
    %v615 = vpop.f32.mrb[0].mxu0
    %v616 = vpop.f32.mrb[0].mxu0
    %v617 = vpop.f32.mrb[0].mxu0
    %618 = vdwg.mxu0
    %v619 = vadd.f32 %v513, %v614
    %v620 = vpack.c.bf16 %v619, %v619
    %s621 = scalar_lea.vmem %s1, 32
    %v622 = vld [vmem:[%s621] sm:$0xf]
    %v623 = vld [vmem:[%s621 + $0x4] sm:$0xf]
    %v624 = vld [vmem:[%s621 + $0x8] sm:$0xf]
    %v625 = vld [vmem:[%s621 + $0xc] sm:$0xf]
    %v626 = vld [vmem:[%s5 + $0x4] sm:$0x1]
    %v627 = vlaneseq
    %v628 = vshrl.u32 %v627, 7
    %v629 = vsub.s32 0, %v628
    %v630 = vrot.slane %v626, %v629
    %v635 = vunpack.c.l.b16 %v622
    %v636 = vunpack.c.l.b16 %v623
    %v637 = vunpack.c.l.b16 %v624
    %v638 = vunpack.c.l.b16 %v625
    %v639 = vpack.c.b16 %v636, %v635
    %v640 = vpack.c.b16 %v638, %v637
    %v644 = vsel %vm93, %v620, 0
    %646 = vmatprep.subr.bf16.mxu0 0
    %647 = vmatpush1.bf16.msra.mxu0 %v639
    %648 = vmatprep.subr.bf16.mxu0 0
    %649 = vmatpush1.bf16.msra.mxu0 %v640
    %650 = vmatprep.subr.bf16.mxu0 0
    %651 = vmatpush1.bf16.msra.mxu0 0
    %652 = vmatprep.subr.bf16.mxu0 0
    %653 = vmatpush1.bf16.msra.mxu0 0
    %654 = vmatprep.subr.bf16.mxu0 0
    %655 = vmatpush1.bf16.msra.mxu0 0
    %656 = vmatprep.subr.bf16.mxu0 0
    %657 = vmatpush1.bf16.msra.mxu0 0
    %658 = vmatprep.subr.bf16.mxu0 0
    %659 = vmatpush1.bf16.msra.mxu0 0
    %660 = vmatprep.subr.bf16.mxu0 0
    %661 = vmatpush1.bf16.msra.mxu0 0
    %662 = vmatprep.subr.bf16.mxu0 0
    %663 = vmatpush1.bf16.msra.mxu0 0
    %664 = vmatprep.subr.bf16.mxu0 0
    %665 = vmatpush1.bf16.msra.mxu0 0
    %666 = vmatprep.subr.bf16.mxu0 0
    %667 = vmatpush1.bf16.msra.mxu0 0
    %668 = vmatprep.subr.bf16.mxu0 0
    %669 = vmatpush1.bf16.msra.mxu0 0
    %670 = vmatprep.subr.bf16.mxu0 0
    %671 = vmatpush1.bf16.msra.mxu0 0
    %672 = vmatprep.subr.bf16.mxu0 0
    %673 = vmatpush1.bf16.msra.mxu0 0
    %674 = vmatprep.subr.bf16.mxu0 0
    %675 = vmatpush1.bf16.msra.mxu0 0
    %676 = vmatprep.subr.bf16.mxu0 0
    %677 = vmatpush1.bf16.msra.mxu0 0
    %678 = vmatprep.mubr.bf16.mxu0 0
    %679 = vmatmul.mubr.bf16.gmra.mrb[0].mxu0 %v644
    %v680 = vpop.f32.mrb[0].mxu0
    %v681 = vadd.f32 %v630, %v680
    %v682 = vpop.f32.mrb[0].mxu0
    %v683 = vpop.f32.mrb[0].mxu0
    %v684 = vpop.f32.mrb[0].mxu0
    %685 = vdwg.mxu0
    %v686 = vadd.f32 %v237, %v681
    %v687 = vpack.c.bf16 %v686, %v686
    %s688 = scalar_lea.vmem %s1, 48
    %v689 = vld [vmem:[%s688] sm:$0xf]
    %v690 = vld [vmem:[%s688 + $0x4] sm:$0xf]
    %v691 = vld [vmem:[%s688 + $0x8] sm:$0xf]
    %v692 = vld [vmem:[%s688 + $0xc] sm:$0xf]
    %v693 = vld [vmem:[%s5 + $0x5] sm:$0x1]
    %v694 = vlaneseq
    %v695 = vshrl.u32 %v694, 7
    %v696 = vsub.s32 0, %v695
    %v697 = vrot.slane %v693, %v696
    %v702 = vunpack.c.l.b16 %v689
    %v703 = vunpack.c.l.b16 %v690
    %v704 = vunpack.c.l.b16 %v691
    %v705 = vunpack.c.l.b16 %v692
    %v706 = vpack.c.b16 %v703, %v702
    %v707 = vpack.c.b16 %v705, %v704
    %v711 = vsel %vm93, %v687, 0
    %713 = vmatprep.subr.bf16.mxu0 0
    %714 = vmatpush1.bf16.msra.mxu0 %v706
    %715 = vmatprep.subr.bf16.mxu0 0
    %716 = vmatpush1.bf16.msra.mxu0 %v707
    %717 = vmatprep.subr.bf16.mxu0 0
    %718 = vmatpush1.bf16.msra.mxu0 0
    %719 = vmatprep.subr.bf16.mxu0 0
    %720 = vmatpush1.bf16.msra.mxu0 0
    %721 = vmatprep.subr.bf16.mxu0 0
    %722 = vmatpush1.bf16.msra.mxu0 0
    %723 = vmatprep.subr.bf16.mxu0 0
    %724 = vmatpush1.bf16.msra.mxu0 0
    %725 = vmatprep.subr.bf16.mxu0 0
    %726 = vmatpush1.bf16.msra.mxu0 0
    %727 = vmatprep.subr.bf16.mxu0 0
    %728 = vmatpush1.bf16.msra.mxu0 0
    %729 = vmatprep.subr.bf16.mxu0 0
    %730 = vmatpush1.bf16.msra.mxu0 0
    %731 = vmatprep.subr.bf16.mxu0 0
    %732 = vmatpush1.bf16.msra.mxu0 0
    %733 = vmatprep.subr.bf16.mxu0 0
    %734 = vmatpush1.bf16.msra.mxu0 0
    %735 = vmatprep.subr.bf16.mxu0 0
    %736 = vmatpush1.bf16.msra.mxu0 0
    %737 = vmatprep.subr.bf16.mxu0 0
    %738 = vmatpush1.bf16.msra.mxu0 0
    %739 = vmatprep.subr.bf16.mxu0 0
    %740 = vmatpush1.bf16.msra.mxu0 0
    %741 = vmatprep.subr.bf16.mxu0 0
    %742 = vmatpush1.bf16.msra.mxu0 0
    %743 = vmatprep.subr.bf16.mxu0 0
    %744 = vmatpush1.bf16.msra.mxu0 0
    %745 = vmatprep.mubr.bf16.mxu0 0
    %746 = vmatmul.mubr.bf16.gmra.mrb[0].mxu0 %v711
    %v747 = vpop.f32.mrb[0].mxu0
    %v748 = vadd.f32 %v697, %v747
    %v749 = vpop.f32.mrb[0].mxu0
    %v750 = vpop.f32.mrb[0].mxu0
    %v751 = vpop.f32.mrb[0].mxu0
    %752 = vdwg.mxu0
    %v753 = vmul.f32 %v748, %v748
    %v754 = vmul.f32 %v748, %v753
    %v755 = vmul.f32 %v754, 0.044715
    %v756 = vadd.f32 %v748, %v755
    %v757 = vmul.f32 %v756, 0.7978846
    %v758 = vtanh.pop %v757
    %v759 = vadd.f32 %v758, 1.0
    %v760 = vmul.f32 %v759, 0.5
    %v761 = vmul.f32 %v748, %v760
    %v762 = vpack.c.bf16 %v761, %v761
    %s763 = scalar_lea.vmem %s1, 64
    %v764 = vld [vmem:[%s763] sm:$0xf]
    %v765 = vld [vmem:[%s763 + $0x4] sm:$0xf]
    %v766 = vld [vmem:[%s763 + $0x8] sm:$0xf]
    %v767 = vld [vmem:[%s763 + $0xc] sm:$0xf]
    %v768 = vld [vmem:[%s5 + $0x6] sm:$0x1]
    %v769 = vlaneseq
    %v770 = vshrl.u32 %v769, 7
    %v771 = vsub.s32 0, %v770
    %v772 = vrot.slane %v768, %v771
    %v777 = vunpack.c.l.b16 %v764
    %v778 = vunpack.c.l.b16 %v765
    %v779 = vunpack.c.l.b16 %v766
    %v780 = vunpack.c.l.b16 %v767
    %v781 = vpack.c.b16 %v778, %v777
    %v782 = vpack.c.b16 %v780, %v779
    %v786 = vsel %vm93, %v762, 0
    %788 = vmatprep.subr.bf16.mxu0 0
    %789 = vmatpush1.bf16.msra.mxu0 %v781
    %790 = vmatprep.subr.bf16.mxu0 0
    %791 = vmatpush1.bf16.msra.mxu0 %v782
    %792 = vmatprep.subr.bf16.mxu0 0
    %793 = vmatpush1.bf16.msra.mxu0 0
    %794 = vmatprep.subr.bf16.mxu0 0
    %795 = vmatpush1.bf16.msra.mxu0 0
    %796 = vmatprep.subr.bf16.mxu0 0
    %797 = vmatpush1.bf16.msra.mxu0 0
    %798 = vmatprep.subr.bf16.mxu0 0
    %799 = vmatpush1.bf16.msra.mxu0 0
    %800 = vmatprep.subr.bf16.mxu0 0
    %801 = vmatpush1.bf16.msra.mxu0 0
    %802 = vmatprep.subr.bf16.mxu0 0
    %803 = vmatpush1.bf16.msra.mxu0 0
    %804 = vmatprep.subr.bf16.mxu0 0
    %805 = vmatpush1.bf16.msra.mxu0 0
    %806 = vmatprep.subr.bf16.mxu0 0
    %807 = vmatpush1.bf16.msra.mxu0 0
    %808 = vmatprep.subr.bf16.mxu0 0
    %809 = vmatpush1.bf16.msra.mxu0 0
    %810 = vmatprep.subr.bf16.mxu0 0
    %811 = vmatpush1.bf16.msra.mxu0 0
    %812 = vmatprep.subr.bf16.mxu0 0
    %813 = vmatpush1.bf16.msra.mxu0 0
    %814 = vmatprep.subr.bf16.mxu0 0
    %815 = vmatpush1.bf16.msra.mxu0 0
    %816 = vmatprep.subr.bf16.mxu0 0
    %817 = vmatpush1.bf16.msra.mxu0 0
    %818 = vmatprep.subr.bf16.mxu0 0
    %819 = vmatpush1.bf16.msra.mxu0 0
    %820 = vmatprep.mubr.bf16.mxu0 0
    %821 = vmatmul.mubr.bf16.gmra.mrb[0].mxu0 %v786
    %v822 = vpop.f32.mrb[0].mxu0
    %v823 = vadd.f32 %v772, %v822
    %v824 = vpop.f32.mrb[0].mxu0
    %v825 = vpop.f32.mrb[0].mxu0
    %v826 = vpop.f32.mrb[0].mxu0
    %827 = vdwg.mxu0
    %828 = vst.msk [vmem:[#allocation8] sm:$0xff] %vm93, %v823
    %830 = vrot.lane.b32.xlu0 %v360, 1
    %v831 = vpop.permute.xlu0 %830
    %vm833 = vcmask 7168
    %v834 = vsel %vm833, %v373, %v831
    %v835 = vsel %vm93, %v834, %v399
    %vm836 = vcmask 269312
    %v837 = vsel %vm836, %v835, %v831
    %v838 = vsel %vm485, %v837, %v428
    %vm839 = vcmask 531456
    %v840 = vsel %vm839, %v838, %v831
    %v841 = vsel %vm489, %v840, %v457
    %vm842 = vcmask 793600
    %v843 = vsel %vm842, %v841, %v831
    %844 = vst [vmem:[#allocation9] sm:$0xff] %v843
    // Predicated region
    $region42: #{tpu_custom_call.1} parent=1 // pred_check
      _
    $region43: #{tpu_custom_call.1} parent=1 // pred_check_branch
      %846 = sbr.rel (0) target = $region45
    $region44: #{tpu_custom_call.1} parent=1 // pred_region
      %s848 = ssub.s32 128, 128
      %849 = vsyncadd [#allocation4], %s848
      %s851 = sshll.u32 [#allocation8], 4
      %s852 = int_to_ptr.vmem [resolvable:$true] %s851
      %854 = dma.vmem_to_hbm [thread:$0]  %s852, 128, %s7, [#allocation4]
    $region45: #{tpu_custom_call.1} parent=1 // pred_fallthru
      _
    // Predicated region
    $region46: #{tpu_custom_call.1} parent=1 // pred_check
      _
    $region47: #{tpu_custom_call.1} parent=1 // pred_check_branch
      %856 = sbr.rel (0) target = $region49
    $region48: #{tpu_custom_call.1} parent=1 // pred_region
      %s858 = ssub.s32 128, 128
      %859 = vsyncadd [#allocation10], %s858
      %s861 = sshll.u32 [#allocation9], 4
      %s862 = int_to_ptr.vmem [resolvable:$true] %s861
      %864 = dma.vmem_to_hbm [thread:$0]  %s862, 128, %s8, [#allocation10]
    $region49: #{tpu_custom_call.1} parent=1 // pred_fallthru
      _
    // Predicated region
    $region50: #{tpu_custom_call.1} parent=1 // pred_check
      _
    $region51: #{tpu_custom_call.1} parent=1 // pred_check_branch
      %866 = sbr.rel (0) target = $region53
    $region52: #{tpu_custom_call.1} parent=1 // pred_region
      %867 = dma.done [#allocation4], 128
    $region53: #{tpu_custom_call.1} parent=1 // pred_fallthru
      _
    // Predicated region
    $region54: #{tpu_custom_call.1} parent=1 // pred_check
      _
    $region55: #{tpu_custom_call.1} parent=1 // pred_check_branch
      %869 = sbr.rel (0) target = $region57
    $region56: #{tpu_custom_call.1} parent=1 // pred_region
      %870 = dma.done [#allocation10], 128
    $region57: #{tpu_custom_call.1} parent=1 // pred_fallthru
      _
    %871 = vsyncpa [#allocation3], 1
    %872 = vsyncpa [#allocation6], 1
    %873 = vsyncpa [#allocation4], 1
    %874 = vsyncpa [#allocation10], 1

</llo_original>
